<compile_context>
chip_gen: v6e
topology: v6e:2x2x1
jax: 0.10.0
libtpu: 0.0.40
codegen_flags: <defaults>
</compile_context>

<pallas_src>
import jax
import jax.numpy as jnp
from jax.experimental import pallas as pl
from jax.experimental.pallas import tpu as pltpu


_LANES = 128
_SUBLANES = 8
_PACK = _LANES * _SUBLANES  # 1024: full f32 vreg granularity


def _distill_kernel(it_ref, cur_ref, x_out_ref):
    # cur_ref / x_out_ref: (t_rows, 128) lane- and sublane-dense f32 tiles of
    # curriculum[it[i]]. tanh goes to the EUP, the *2 to the VPU; stores are
    # full-lane unmasked vst.
    del it_ref  # only consumed by the BlockSpec index_maps
    x_out_ref[...] = jnp.tanh(cur_ref[...]) * 2.0


def _pick_row_tile(rows, itemsize, target_bytes=2 << 20):
    """Row tile (multiple of 8 sublanes) whose (t_rows, 128) block ~= target_bytes.

    ~2 MiB blocks keep the double-buffered input+output footprint at ~8 MiB,
    well under v5e's 16 MiB default scoped VMEM and v7x's 32 MiB scoped /
    64 MiB physical VMEM; mem-bound elementwise saturates HBM well before that.
    """
    cap = max(
        _SUBLANES,
        (target_bytes // (_LANES * itemsize)) // _SUBLANES * _SUBLANES,
    )
    return int(min(rows, cap))


def dataset_distillation_forward(curriculum, labels_one_hot, it):
    """curriculum: (N, B, C, H, W) f32; labels_one_hot: (N, B, 10) f32.

    `it` may be a scalar (Python int / 0-d array, matching the PyTorch
    forward) or a 1-D int array of K iteration indices; the batched form runs
    all K iterations in a single kernel launch.
    """
    N, B, C, H, W = curriculum.shape
    F = C * H * W
    total = B * F
    itemsize = jnp.dtype(curriculum.dtype).itemsize

    scalar_it = jnp.ndim(it) == 0
    it_arr = jnp.atleast_1d(jnp.asarray(it, dtype=jnp.int32))
    # An out-of-range `it` would drive an out-of-bounds DMA through the
    # scalar-prefetch index_map — clamp to valid iterations.
    it_arr = jnp.clip(it_arr, 0, N - 1)
    K = it_arr.shape[0]

    # Lane- AND sublane-dense view: per-iteration data as (rows, 128) rows with
    # rows a multiple of 8 (pad the flattened features if needed, e.g. MNIST
    # 784), so every vreg is fully populated even when B < 8.
    padded = ((total + _PACK - 1) // _PACK) * _PACK
    rows = padded // _LANES
    cur_flat = curriculum.reshape(N, total)
    if padded != total:
        cur_flat = jnp.pad(cur_flat, ((0, 0), (0, padded - total)))
    cur3d = cur_flat.reshape(N, rows, _LANES)

    t_rows = _pick_row_tile(rows, itemsize)
    grid = (K, pl.cdiv(rows, t_rows))

    grid_spec = pltpu.PrefetchScalarGridSpec(
        num_scalar_prefetch=1,
        grid=grid,
        in_specs=[
            # Data-dependent block index along the iteration axis comes from
            # the scalar-prefetched `it` vector (SMEM). Leading dim squeezed,
            # so the kernel sees a (t_rows, 128) tile of curriculum[it[i]].
            pl.BlockSpec(
                (pl.Squeezed(), t_rows, _LANES),
                lambda i, j, it_ref: (it_ref[i], j, 0),
            ),
        ],
        out_specs=pl.BlockSpec(
            (pl.Squeezed(), t_rows, _LANES),
            lambda i, j, it_ref: (i, j, 0),
        ),
    )

    elems = K * rows * _LANES
    cost = pl.CostEstimate(
        flops=elems,                          # the *2 scale
        transcendentals=elems,                # tanh on the EUP
        bytes_accessed=2 * elems * itemsize,  # read curriculum + write output
    )

    x3d = pl.pallas_call(
        _distill_kernel,
        grid_spec=grid_spec,
        out_shape=jax.ShapeDtypeStruct((K, rows, _LANES), curriculum.dtype),
        compiler_params=pltpu.CompilerParams(
            dimension_semantics=("parallel", "parallel"),
        ),
        cost_estimate=cost,
    )(it_arr, cur3d)

    x = x3d.reshape(K, padded)[:, :total].reshape(K, B, C, H, W)

    # Label path: zero-compute gather — keep it out of the Pallas kernel
    # (a (B, 10) in-kernel tile would force a masked 10-lane partial store).
    y = jnp.take(labels_one_hot, it_arr, axis=0)

    if scalar_it:
        return x[0], y[0]
    return x, y


def init_params(key, num_inner_iterations, generator_batch_size, img_shape):
    """Deterministic parameter init mirroring the module's __init__."""
    k_lbl, k_cur = jax.random.split(key)
    curriculum_labels = jax.random.randint(
        k_lbl, (num_inner_iterations, generator_batch_size), 0, 10, dtype=jnp.int32
    )
    curriculum_labels_one_hot = jax.nn.one_hot(
        curriculum_labels, 10, dtype=jnp.float32
    )  # (N, B, 10)
    curriculum = jax.random.normal(
        k_cur,
        (num_inner_iterations, generator_batch_size) + img_shape,
        dtype=jnp.float32,
    )  # (N, B, C, H, W)
    return curriculum, curriculum_labels_one_hot, curriculum_labels


if __name__ == "__main__":
    num_inner_iterations = 8
    generator_batch_size = 2
    img_shape = (4, 16, 16)  # (C, H, W) — C*H*W = 1024

    key = jax.random.PRNGKey(0)
    curriculum, labels_one_hot, labels = init_params(
        key, num_inner_iterations, generator_batch_size, img_shape
    )

    # Scalar path — exactly the PyTorch forward(it).
    it = jnp.int32(3)  # device scalar: one compiled executable for all `it`
    x_out, y_out = dataset_distillation_forward(curriculum, labels_one_hot, it)
    jax.block_until_ready((x_out, y_out))

    x_ref = jnp.tanh(curriculum[3]) * 2.0
    y_ref = labels_one_hot[3]
    assert x_out.shape == (generator_batch_size,) + img_shape
    assert y_out.shape == (generator_batch_size, 10)
    assert jnp.allclose(x_out, x_ref, atol=1e-6), "image output mismatch"
    assert jnp.allclose(y_out, y_ref), "label output mismatch"

    # Batched path — K iterations in one launch (amortizes launch overhead,
    # pipelines DMA across iterations, feeds both v7x TensorCores).
    its = jnp.array([0, 3, 5, 7], dtype=jnp.int32)
    xb, yb = dataset_distillation_forward(curriculum, labels_one_hot, its)
    jax.block_until_ready((xb, yb))
    assert xb.shape == (4, generator_batch_size) + img_shape
    assert yb.shape == (4, generator_batch_size, 10)
    assert jnp.allclose(xb, jnp.tanh(curriculum[its]) * 2.0, atol=1e-6), "batched image mismatch"
    assert jnp.allclose(yb, labels_one_hot[its]), "batched label mismatch"

    print("KERNEL_OK")
</pallas_src>

<mosaic_0001>
module attributes {stable_mosaic.version = 11 : i64} {
  func.func @_distill_kernel(%arg0: i32, %arg1: i32, %arg2: memref<1xi32, #tpu.memory_space<smem>>, %arg3: memref<1x16x128xf32, #tpu.memory_space<vmem>>, %arg4: memref<1x16x128xf32, #tpu.memory_space<vmem>>) attributes {dimension_semantics = [#tpu.dimension_semantics<parallel>, #tpu.dimension_semantics<parallel>], iteration_bounds = array<i64: 1, 1>, scalar_prefetch = 1 : i64, scratch_operands = 0 : i64, tpu.core_type = #tpu.core_type<tc>, window_params = [{transform_indices = @transform_0, window_bounds = array<i64: 1, 16, 128>}, {transform_indices = @transform_1, window_bounds = array<i64: 1, 16, 128>}]} {
    %c0 = arith.constant 0 : index
    %c0_0 = arith.constant 0 : index
    %c0_1 = arith.constant 0 : index
    %0 = vector.load %arg3[%c0, %c0_0, %c0_1] : memref<1x16x128xf32, #tpu.memory_space<vmem>>, vector<1x16x128xf32>
    %1 = vector.shape_cast %0 : vector<1x16x128xf32> to vector<16x128xf32>
    %2 = math.tanh %1 : vector<16x128xf32>
    %cst = arith.constant 2.000000e+00 : f32
    %3 = vector.broadcast %cst : f32 to vector<16x128xf32>
    %4 = arith.mulf %2, %3 : vector<16x128xf32>
    %c0_2 = arith.constant 0 : index
    %c0_3 = arith.constant 0 : index
    %c0_4 = arith.constant 0 : index
    %5 = vector.load %arg4[%c0_2, %c0_3, %c0_4] : memref<1x16x128xf32, #tpu.memory_space<vmem>>, vector<1x16x128xf32>
    %6 = vector.shape_cast %5 : vector<1x16x128xf32> to vector<16x128xf32>
    %7 = vector.shape_cast %4 : vector<16x128xf32> to vector<1x16x128xf32>
    tpu.vector_store %arg4[%c0_2, %c0_3, %c0_4], %7 {strides = array<i32>} : memref<1x16x128xf32, #tpu.memory_space<vmem>>, vector<1x16x128xf32>,
    return
  }
  func.func @transform_0(%arg0: i32, %arg1: i32, %arg2: memref<1xi32, #tpu.memory_space<smem>>) -> (i32, i32, i32) {
    %0 = arith.index_cast %arg0 : i32 to index
    %1 = memref.load %arg2[%0] : memref<1xi32, #tpu.memory_space<smem>>
    %c0_i32 = arith.constant 0 : i32
    %c0_i32_0 = arith.constant 0 : i32
    return %1, %arg1, %c0_i32 : i32, i32, i32
  }
  func.func @transform_1(%arg0: i32, %arg1: i32, %arg2: memref<1xi32, #tpu.memory_space<smem>>) -> (i32, i32, i32) {
    %c0_i32 = arith.constant 0 : i32
    %c0_i32_0 = arith.constant 0 : i32
    return %arg0, %arg1, %c0_i32 : i32, i32, i32
  }
}

</mosaic_0001>

<llo_original>
// kernel: tpu_custom_call.1
$region0: #{tpu_custom_call.1}
  #allocation0 [shape = 'u32[]', space=smem, size = 0x4, offset = 0x4, fixed_abs, tag = 'smem constant byte address 0x4 - core index']
  #allocation1 [shape = 'u32[144,128]{1,0:T(1,128)}', space=vmem, size = 0x12000, scoped, tag = 'internal scratch']
  #allocation2 [shape = 's32[1]{0}', space=sflag, size = 0x4, scoped, tag = 'scoped memory for tpu_custom_call.1']
  #allocation3 [shape = 's32[1]{0:T(128)S(6)}', space=smem, size = 0x200, scoped, tag = 'prefetched SMEM operand 0']
  %s0 = inlined_call_operand.<no memory space> [shape: s32[1], index: 0, kind: input, shape index: {}]
  %s1 = inlined_call_operand.hbm [shape: f32[8,16,128], index: 1, kind: input, shape index: {}]
  %s2 = inlined_call_operand.hbm [shape: f32[1,16,128], index: 2, kind: output, shape index: {}]
  %s3 = sld [smem:[#allocation0]]
  $region18: #{tpu_custom_call.1} parent=0
    _
  %s5 = ssub.s32 1, %s3
  %s6 = scalar_select 0, %s5, %s3
  %7 = sst [smem:[#allocation3]] %s0
  $region1: #{tpu_custom_call.1} parent=0
    #allocation4 [shape = 'u8[8192]{0}', space=vmem, size = 0x2000, scoped, tag = 'input window, operand 1, single buffered']
    #allocation5 [shape = 's32[1]{0}', space=sflag, size = 0x4, scoped, tag = 'scoped memory for tpu_custom_call.1']
    #allocation6 [shape = 's32[1]{0}', space=sflag, size = 0x4, scoped, tag = 'scoped memory for tpu_custom_call.1']
    #allocation7 [shape = 'u8[8192]{0}', space=vmem, size = 0x2000, scoped, tag = 'output window, operand 0, single buffered']
    %8 = vsyncpa [#allocation5], 0
    %9 = vsyncpa [#allocation6], 0
    // Predicated region
    $region2: #{tpu_custom_call.1} parent=1 // pred_check
      _
    $region3: #{tpu_custom_call.1} parent=1 // pred_check_branch
      %11 = sbr.rel (0) target = $region5
    $region4: #{tpu_custom_call.1} parent=1 // pred_region
      %s12 = sld [smem:[#allocation3]]
      %s14 = ssub.s32 256, 256
      %15 = vsyncadd [#allocation5], %s14
      %s16 = smul.addr %s12, 2
      %s17 = smul.addr %s16, 128
      %s18 = scalar_lea.hbm %s1, %s17
      %s19 = sshll.u32 [#allocation4], 4
      %s20 = int_to_ptr.vmem [resolvable:$true] %s19
      %25 = dma.hbm_to_vmem [thread:$0]  %s18, 256, %s20, [#allocation5], 128, 128, 8
    $region5: #{tpu_custom_call.1} parent=1 // pred_fallthru
      _
    // Predicated region
    $region6: #{tpu_custom_call.1} parent=1 // pred_check
      _
    $region7: #{tpu_custom_call.1} parent=1 // pred_check_branch
      %27 = sbr.rel (0) target = $region9
    $region8: #{tpu_custom_call.1} parent=1 // pred_region
      %28 = dma.done [#allocation5], 256
    $region9: #{tpu_custom_call.1} parent=1 // pred_fallthru
      _
    %s29 = sld [smem:[#allocation3]]
    %v30 = vld [vmem:[#allocation4] sm:$0xff]
    %v31 = vld [vmem:[#allocation4 + $0x8] sm:$0xff]
    %v32 = vtanh.pop %v30
    %v33 = vtanh.pop %v31
    %v34 = vmul.f32 %v32, 2.0
    %v35 = vmul.f32 %v33, 2.0
    %36 = vst [vmem:[#allocation7] sm:$0xff] %v34
    %37 = vst [vmem:[#allocation7 + $0x8] sm:$0xff] %v35
    // Predicated region
    $region10: #{tpu_custom_call.1} parent=1 // pred_check
      _
    $region11: #{tpu_custom_call.1} parent=1 // pred_check_branch
      %39 = sbr.rel (0) target = $region13
    $region12: #{tpu_custom_call.1} parent=1 // pred_region
      %s41 = ssub.s32 256, 256
      %42 = vsyncadd [#allocation6], %s41
      %s43 = sshll.u32 [#allocation7], 4
      %s44 = int_to_ptr.vmem [resolvable:$true] %s43
      %49 = dma.vmem_to_hbm [thread:$0]  %s44, 256, %s2, [#allocation6], 128, 128, 8
    $region13: #{tpu_custom_call.1} parent=1 // pred_fallthru
      _
    // Predicated region
    $region14: #{tpu_custom_call.1} parent=1 // pred_check
      _
    $region15: #{tpu_custom_call.1} parent=1 // pred_check_branch
      %51 = sbr.rel (0) target = $region17
    $region16: #{tpu_custom_call.1} parent=1 // pred_region
      %52 = dma.done [#allocation6], 256
    $region17: #{tpu_custom_call.1} parent=1 // pred_fallthru
      _
    %53 = vsyncpa [#allocation5], 1
    %54 = vsyncpa [#allocation6], 1

</llo_original>
